<compile_context>
chip_gen: v7x
topology: tpu7x:2x2x1
jax: 0.10.0
libtpu: 0.0.40
codegen_flags: <defaults>
</compile_context>

<pallas_src>
import jax
import jax.numpy as jnp
from jax.experimental import pallas as pl
from jax.experimental.pallas import tpu as pltpu


def _linear_kernel(x_ref, w_ref, b_ref, o_ref):
    # x_ref : (B, H)  w_ref : (C, H)  b_ref : (1, C)  o_ref : (B, C)
    # Contract on H (axis 1 of both operands); the MXU handles the transposed
    # RHS natively, so the PyTorch (C, H) layout is used as-is.
    acc = jax.lax.dot_general(
        x_ref[...],
        w_ref[...],
        dimension_numbers=(((1,), (1,)), ((), ())),
        preferred_element_type=jnp.float32,
    )
    o_ref[...] = (acc + b_ref[...]).astype(o_ref.dtype)


def prepare_params(weight, bias):
    """One-time parameter preparation (at load time, NOT on the per-call path).

    weight : (C, H) float32  — kept exactly as the PyTorch nn.Linear layout.
    bias   : (C,)   float32  — reshaped once to (1, C) so it's a 2-D VMEM tile.
    """
    return weight, bias.reshape(1, -1)


def roberta_label_classifier(pooled_output, weight, bias_2d):
    """Pallas equivalent of RoBERTaLabelClassifier.forward.

    pooled_output : (B, H) float32
    weight        : (C, H) float32   (PyTorch nn.Linear layout, unmodified)
    bias_2d       : (1, C) float32   (from prepare_params)
    returns       : (B, C) float32
    """
    B, H = pooled_output.shape
    C = weight.shape[0]

    return pl.pallas_call(
        _linear_kernel,
        out_shape=jax.ShapeDtypeStruct((B, C), pooled_output.dtype),
        grid_spec=pltpu.PrefetchScalarGridSpec(
            num_scalar_prefetch=0,
            grid=(),  # whole problem fits in one VMEM tile; no pipelining needed
            in_specs=[
                pl.BlockSpec((B, H), lambda: (0, 0)),
                pl.BlockSpec((C, H), lambda: (0, 0)),
                pl.BlockSpec((1, C), lambda: (0, 0)),
            ],
            out_specs=pl.BlockSpec((B, C), lambda: (0, 0)),
        ),
        cost_estimate=pl.CostEstimate(
            flops=2 * B * H * C,
            bytes_accessed=(B * H + C * H + C + B * C) * 4,
            transcendentals=0,
        ),
    )(pooled_output, weight, bias_2d)


def init_params(key, hidden_size, n_classes):
    # Deterministic init mimicking nn.Linear's uniform(-1/sqrt(H), 1/sqrt(H)).
    kw, kb = jax.random.split(key)
    bound = 1.0 / jnp.sqrt(jnp.float32(hidden_size))
    weight = jax.random.uniform(kw, (n_classes, hidden_size), jnp.float32,
                                minval=-bound, maxval=bound)
    bias = jax.random.uniform(kb, (n_classes,), jnp.float32,
                              minval=-bound, maxval=bound)
    return weight, bias


if __name__ == "__main__":
    key = jax.random.PRNGKey(0)
    k_in, k_param = jax.random.split(key)

    # Module defaults: hidden_size=768, n_classes=2; small batch.
    batch, hidden_size, n_classes = 8, 768, 2
    pooled_output = jax.random.normal(k_in, (batch, hidden_size), jnp.float32)
    weight, bias = init_params(k_param, hidden_size, n_classes)

    # One-time parameter prep (hoisted out of the per-call path).
    weight_prep, bias_prep = prepare_params(weight, bias)
    weight_prep = jax.block_until_ready(weight_prep)
    bias_prep = jax.block_until_ready(bias_prep)

    out = roberta_label_classifier(pooled_output, weight_prep, bias_prep)
    out = jax.block_until_ready(out)

    # Sanity check against plain JAX reference (PyTorch semantics: x @ W.T + b).
    ref = pooled_output @ weight.T + bias
    assert out.shape == (batch, n_classes)
    assert jnp.allclose(out, ref, atol=1e-5, rtol=1e-5)

    print("KERNEL_OK")
</pallas_src>

<mosaic_0001>
module attributes {stable_mosaic.version = 11 : i64} {
  func.func @_linear_kernel(%arg0: memref<8x768xf32, #tpu.memory_space<vmem>>, %arg1: memref<2x768xf32, #tpu.memory_space<vmem>>, %arg2: memref<1x2xf32, #tpu.memory_space<vmem>>, %arg3: memref<8x2xf32, #tpu.memory_space<vmem>>) attributes {dimension_semantics = [], scalar_prefetch = 0 : i64, scratch_operands = 0 : i64, tpu.core_type = #tpu.core_type<tc>} {
    %c0 = arith.constant 0 : index
    %c0_0 = arith.constant 0 : index
    %0 = vector.load %arg0[%c0, %c0_0] : memref<8x768xf32, #tpu.memory_space<vmem>>, vector<8x768xf32>
    %c0_1 = arith.constant 0 : index
    %c0_2 = arith.constant 0 : index
    %1 = vector.load %arg1[%c0_1, %c0_2] : memref<2x768xf32, #tpu.memory_space<vmem>>, vector<2x768xf32>
    %cst = arith.constant dense<0.000000e+00> : vector<8x2xf32>
    %2 = tpu.matmul %0, %1, %cst {dimension_numbers = #tpu.dot_dimension_numbers<[1], [1], [0], [0], [0, 0, 1, 0], [], []>} : vector<8x768xf32>, vector<2x768xf32>, vector<8x2xf32> -> vector<8x2xf32>
    %c0_3 = arith.constant 0 : index
    %c0_4 = arith.constant 0 : index
    %3 = vector.load %arg2[%c0_3, %c0_4] : memref<1x2xf32, #tpu.memory_space<vmem>>, vector<1x2xf32>
    %4 = vector.broadcast %3 : vector<1x2xf32> to vector<8x2xf32>
    %5 = arith.addf %2, %4 : vector<8x2xf32>
    %c0_5 = arith.constant 0 : index
    %c0_6 = arith.constant 0 : index
    %6 = vector.load %arg3[%c0_5, %c0_6] : memref<8x2xf32, #tpu.memory_space<vmem>>, vector<8x2xf32>
    tpu.vector_store %arg3[%c0_5, %c0_6], %5 {strides = array<i32>} : memref<8x2xf32, #tpu.memory_space<vmem>>, vector<8x2xf32>,
    return
  }
}

</mosaic_0001>

<llo_original>
// kernel: tpu_custom_call.1
$region0: #{tpu_custom_call.1}
  #allocation0 [shape = 'u32[]', space=smem, size = 0x4, offset = 0x4, fixed_abs, tag = 'smem constant byte address 0x4 - core index']
  #allocation1 [shape = 'u32[144,128]{1,0:T(1,128)}', space=vmem, size = 0x12000, scoped, tag = 'internal scratch']
  %s0 = inlined_call_operand.hbm [shape: f32[8,768], index: 0, kind: input, shape index: {}]
  %s1 = inlined_call_operand.hbm [shape: f32[2,768], index: 1, kind: input, shape index: {}]
  %s2 = inlined_call_operand.vmem [shape: f32[1,2], index: 2, kind: input, shape index: {}]
  %s3 = inlined_call_operand.vmem [shape: f32[8,2], index: 3, kind: output, shape index: {}]
  %s4 = sld [smem:[#allocation0]]
  $region30: #{tpu_custom_call.1} parent=0
    _
  %s6 = ssub.s32 1, %s4
  %s7 = scalar_select 0, %s6, %s4
  $region1: #{tpu_custom_call.1} parent=0
    #allocation2 [shape = 'u8[24576]{0}', space=vmem, size = 0x6000, scoped, tag = 'input window, operand 0, single buffered']
    #allocation3 [shape = 's32[1]{0}', space=sflag, size = 0x4, scoped, tag = 'scoped memory for tpu_custom_call.1']
    #allocation4 [shape = 'u8[6144]{0}', space=vmem, size = 0x1800, scoped, tag = 'input window, operand 1, single buffered']
    #allocation5 [shape = 's32[1]{0}', space=sflag, size = 0x4, scoped, tag = 'scoped memory for tpu_custom_call.1']
    %8 = vsyncpa [#allocation3], 0
    %9 = vsyncpa [#allocation5], 0
    // Predicated region
    $region2: #{tpu_custom_call.1} parent=1 // pred_check
      _
    $region3: #{tpu_custom_call.1} parent=1 // pred_check_branch
      %11 = sbr.rel (0) target = $region5
    $region4: #{tpu_custom_call.1} parent=1 // pred_region
      %s13 = ssub.s32 768, 768
      %14 = vsyncadd [#allocation3], %s13
      %s16 = sshll.u32 [#allocation2], 4
      %s17 = int_to_ptr.vmem [resolvable:$true] %s16
      %19 = dma.hbm_to_vmem [thread:$0]  %s0, 768, %s17, [#allocation3]
    $region5: #{tpu_custom_call.1} parent=1 // pred_fallthru
      _
    // Predicated region
    $region6: #{tpu_custom_call.1} parent=1 // pred_check
      _
    $region7: #{tpu_custom_call.1} parent=1 // pred_check_branch
      %21 = sbr.rel (0) target = $region9
    $region8: #{tpu_custom_call.1} parent=1 // pred_region
      %s23 = ssub.s32 192, 192
      %24 = vsyncadd [#allocation5], %s23
      %s26 = sshll.u32 [#allocation4], 4
      %s27 = int_to_ptr.vmem [resolvable:$true] %s26
      %29 = dma.hbm_to_vmem [thread:$0]  %s1, 192, %s27, [#allocation5]
    $region9: #{tpu_custom_call.1} parent=1 // pred_fallthru
      _
    // Predicated region
    $region10: #{tpu_custom_call.1} parent=1 // pred_check
      _
    $region11: #{tpu_custom_call.1} parent=1 // pred_check_branch
      %31 = sbr.rel (0) target = $region13
    $region12: #{tpu_custom_call.1} parent=1 // pred_region
      _
    $region13: #{tpu_custom_call.1} parent=1 // pred_fallthru
      _
    // Predicated region
    $region14: #{tpu_custom_call.1} parent=1 // pred_check
      _
    $region15: #{tpu_custom_call.1} parent=1 // pred_check_branch
      %33 = sbr.rel (0) target = $region17
    $region16: #{tpu_custom_call.1} parent=1 // pred_region
      %34 = dma.done [#allocation3], 768
    $region17: #{tpu_custom_call.1} parent=1 // pred_fallthru
      _
    // Predicated region
    $region18: #{tpu_custom_call.1} parent=1 // pred_check
      _
    $region19: #{tpu_custom_call.1} parent=1 // pred_check_branch
      %36 = sbr.rel (0) target = $region21
    $region20: #{tpu_custom_call.1} parent=1 // pred_region
      %37 = dma.done [#allocation5], 192
    $region21: #{tpu_custom_call.1} parent=1 // pred_fallthru
      _
    %v38 = vld [vmem:[#allocation2] sm:$0xff]
    %v39 = vld [vmem:[#allocation2 + $0x8] sm:$0xff]
    %v40 = vld [vmem:[#allocation2 + $0x10] sm:$0xff]
    %v41 = vld [vmem:[#allocation2 + $0x18] sm:$0xff]
    %v42 = vld [vmem:[#allocation2 + $0x20] sm:$0xff]
    %v43 = vld [vmem:[#allocation2 + $0x28] sm:$0xff]
    %v44 = vld [vmem:[#allocation4] sm:$0xff]
    %v45 = vld [vmem:[#allocation4 + $0x8] sm:$0xf]
    %v46 = vld [vmem:[%s2] sm:$0x1]
    %v48 = vlaneseq
    %v49 = vshrl.u32 %v48, 7
    %v50 = vsub.s32 0, %v49
    %v51 = vrot.slane %v46, %v50
    %v55 = vcombine.high %v44, %v44
    %v57 = vunpack.c.l.s4 1983009808
    %v58 = vunpack.c.0.s8 %v57
    %v59 = vlaneseq
    %v60 = vshrl.u32 %v59, 7
    %v61 = vsub.s32 %v58, %v60
    %v62 = vrot.slane %v44, %v61
    %v64 = vunpack.c.l.s4 1983009808
    %v65 = vunpack.c.0.s8 %v64
    %v66 = vlaneseq
    %v67 = vshrl.u32 %v66, 7
    %v68 = vsub.s32 %v65, %v67
    %v69 = vrot.slane %v55, %v68
    %v70 = vcombine.high %v62, %v62
    %v71 = vcombine.high %v69, %v69
    %v73 = vunpack.c.l.s4 1983009808
    %v74 = vunpack.c.0.s8 %v73
    %v75 = vlaneseq
    %v76 = vshrl.u32 %v75, 7
    %v77 = vsub.s32 %v74, %v76
    %v78 = vrot.slane %v45, %v77
    %v79 = vcombine.high %v78, %v78
    %86 = vmatprep.subr.mxu0 %v70
    %87 = vmatpush1.xpose.msra.mxu0 %v62
    %88 = vmatprep.subr.mxu0 0.0
    %89 = vmatpush1.xpose.msra.mxu0 0.0
    %90 = vmatprep.subr.mxu0 0.0
    %91 = vmatpush1.xpose.msra.mxu0 0.0
    %92 = vmatprep.subr.mxu0 0.0
    %93 = vmatpush1.xpose.msra.mxu0 0.0
    %94 = vmatprep.subr.mxu0 0.0
    %95 = vmatpush1.xpose.msra.mxu0 0.0
    %96 = vmatprep.subr.mxu0 0.0
    %97 = vmatpush1.xpose.msra.mxu0 0.0
    %98 = vmatprep.subr.mxu0 0.0
    %99 = vmatpush1.xpose.msra.mxu0 0.0
    %100 = vmatprep.subr.mxu0 0.0
    %101 = vmatpush1.xpose.msra.mxu0 0.0
    %102 = vmatprep.subr.mxu0 0.0
    %103 = vmatpush1.xpose.msra.mxu0 0.0
    %104 = vmatprep.subr.mxu0 0.0
    %105 = vmatpush1.xpose.msra.mxu0 0.0
    %106 = vmatprep.subr.mxu0 0.0
    %107 = vmatpush1.xpose.msra.mxu0 0.0
    %108 = vmatprep.subr.mxu0 0.0
    %109 = vmatpush1.xpose.msra.mxu0 0.0
    %110 = vmatprep.subr.mxu0 0.0
    %111 = vmatpush1.xpose.msra.mxu0 0.0
    %112 = vmatprep.subr.mxu0 0.0
    %113 = vmatpush1.xpose.msra.mxu0 0.0
    %114 = vmatprep.subr.mxu0 0.0
    %115 = vmatpush1.xpose.msra.mxu0 0.0
    %116 = vmatprep.subr.mxu0 0.0
    %117 = vmatpush1.xpose.msra.mxu0 0.0
    %118 = vmatprep.subr.mxu0 0.0
    %119 = vmatpush1.xpose.msra.mxu0 0.0
    %120 = vmatprep.subr.mxu0 0.0
    %121 = vmatpush1.xpose.msra.mxu0 0.0
    %122 = vmatprep.subr.mxu0 0.0
    %123 = vmatpush1.xpose.msra.mxu0 0.0
    %124 = vmatprep.subr.mxu0 0.0
    %125 = vmatpush1.xpose.msra.mxu0 0.0
    %126 = vmatprep.subr.mxu0 0.0
    %127 = vmatpush1.xpose.msra.mxu0 0.0
    %128 = vmatprep.subr.mxu0 0.0
    %129 = vmatpush1.xpose.msra.mxu0 0.0
    %130 = vmatprep.subr.mxu0 0.0
    %131 = vmatpush1.xpose.msra.mxu0 0.0
    %132 = vmatprep.subr.mxu0 0.0
    %133 = vmatpush1.xpose.msra.mxu0 0.0
    %134 = vmatprep.subr.mxu0 0.0
    %135 = vmatpush1.xpose.msra.mxu0 0.0
    %136 = vmatprep.subr.mxu0 0.0
    %137 = vmatpush1.xpose.msra.mxu0 0.0
    %138 = vmatprep.subr.mxu0 0.0
    %139 = vmatpush1.xpose.msra.mxu0 0.0
    %140 = vmatprep.subr.mxu0 0.0
    %141 = vmatpush1.xpose.msra.mxu0 0.0
    %142 = vmatprep.subr.mxu0 0.0
    %143 = vmatpush1.xpose.msra.mxu0 0.0
    %144 = vmatprep.subr.mxu0 0.0
    %145 = vmatpush1.xpose.msra.mxu0 0.0
    %146 = vmatprep.subr.mxu0 0.0
    %147 = vmatpush1.xpose.msra.mxu0 0.0
    %148 = vmatprep.subr.mxu0 0.0
    %149 = vmatpush1.xpose.msra.mxu0 0.0
    %150 = vmatprep.mubr.f32.mxu0 %v39
    %151 = vmatmul.mubr.f32.gmra.mrb[0].mxu0 %v38
    %v152 = vpop.f32.mrb[0].mxu0
    %v153 = vadd.f32 %v51, %v152
    %v154 = vpop.f32.mrb[0].mxu0
    %155 = vdwg.mxu0
    %156 = vmatprep.subr.mxu0 %v71
    %157 = vmatpush1.xpose.msra.mxu0 %v69
    %158 = vmatprep.subr.mxu0 0.0
    %159 = vmatpush1.xpose.msra.mxu0 0.0
    %160 = vmatprep.subr.mxu0 0.0
    %161 = vmatpush1.xpose.msra.mxu0 0.0
    %162 = vmatprep.subr.mxu0 0.0
    %163 = vmatpush1.xpose.msra.mxu0 0.0
    %164 = vmatprep.subr.mxu0 0.0
    %165 = vmatpush1.xpose.msra.mxu0 0.0
    %166 = vmatprep.subr.mxu0 0.0
    %167 = vmatpush1.xpose.msra.mxu0 0.0
    %168 = vmatprep.subr.mxu0 0.0
    %169 = vmatpush1.xpose.msra.mxu0 0.0
    %170 = vmatprep.subr.mxu0 0.0
    %171 = vmatpush1.xpose.msra.mxu0 0.0
    %172 = vmatprep.subr.mxu0 0.0
    %173 = vmatpush1.xpose.msra.mxu0 0.0
    %174 = vmatprep.subr.mxu0 0.0
    %175 = vmatpush1.xpose.msra.mxu0 0.0
    %176 = vmatprep.subr.mxu0 0.0
    %177 = vmatpush1.xpose.msra.mxu0 0.0
    %178 = vmatprep.subr.mxu0 0.0
    %179 = vmatpush1.xpose.msra.mxu0 0.0
    %180 = vmatprep.subr.mxu0 0.0
    %181 = vmatpush1.xpose.msra.mxu0 0.0
    %182 = vmatprep.subr.mxu0 0.0
    %183 = vmatpush1.xpose.msra.mxu0 0.0
    %184 = vmatprep.subr.mxu0 0.0
    %185 = vmatpush1.xpose.msra.mxu0 0.0
    %186 = vmatprep.subr.mxu0 0.0
    %187 = vmatpush1.xpose.msra.mxu0 0.0
    %188 = vmatprep.subr.mxu0 0.0
    %189 = vmatpush1.xpose.msra.mxu0 0.0
    %190 = vmatprep.subr.mxu0 0.0
    %191 = vmatpush1.xpose.msra.mxu0 0.0
    %192 = vmatprep.subr.mxu0 0.0
    %193 = vmatpush1.xpose.msra.mxu0 0.0
    %194 = vmatprep.subr.mxu0 0.0
    %195 = vmatpush1.xpose.msra.mxu0 0.0
    %196 = vmatprep.subr.mxu0 0.0
    %197 = vmatpush1.xpose.msra.mxu0 0.0
    %198 = vmatprep.subr.mxu0 0.0
    %199 = vmatpush1.xpose.msra.mxu0 0.0
    %200 = vmatprep.subr.mxu0 0.0
    %201 = vmatpush1.xpose.msra.mxu0 0.0
    %202 = vmatprep.subr.mxu0 0.0
    %203 = vmatpush1.xpose.msra.mxu0 0.0
    %204 = vmatprep.subr.mxu0 0.0
    %205 = vmatpush1.xpose.msra.mxu0 0.0
    %206 = vmatprep.subr.mxu0 0.0
    %207 = vmatpush1.xpose.msra.mxu0 0.0
    %208 = vmatprep.subr.mxu0 0.0
    %209 = vmatpush1.xpose.msra.mxu0 0.0
    %210 = vmatprep.subr.mxu0 0.0
    %211 = vmatpush1.xpose.msra.mxu0 0.0
    %212 = vmatprep.subr.mxu0 0.0
    %213 = vmatpush1.xpose.msra.mxu0 0.0
    %214 = vmatprep.subr.mxu0 0.0
    %215 = vmatpush1.xpose.msra.mxu0 0.0
    %216 = vmatprep.subr.mxu0 0.0
    %217 = vmatpush1.xpose.msra.mxu0 0.0
    %218 = vmatprep.subr.mxu0 0.0
    %219 = vmatpush1.xpose.msra.mxu0 0.0
    %220 = vmatprep.mubr.f32.mxu0 %v41
    %221 = vmatmul.mubr.f32.gmra.mrb[0].mxu0 %v40
    %v222 = vpop.f32.mrb[0].mxu0
    %v223 = vadd.f32 %v153, %v222
    %v224 = vpop.f32.mrb[0].mxu0
    %225 = vdwg.mxu0
    %226 = vmatprep.subr.mxu0 %v79
    %227 = vmatpush1.xpose.msra.mxu0 %v78
    %228 = vmatprep.subr.mxu0 0.0
    %229 = vmatpush1.xpose.msra.mxu0 0.0
    %230 = vmatprep.subr.mxu0 0.0
    %231 = vmatpush1.xpose.msra.mxu0 0.0
    %232 = vmatprep.subr.mxu0 0.0
    %233 = vmatpush1.xpose.msra.mxu0 0.0
    %234 = vmatprep.subr.mxu0 0.0
    %235 = vmatpush1.xpose.msra.mxu0 0.0
    %236 = vmatprep.subr.mxu0 0.0
    %237 = vmatpush1.xpose.msra.mxu0 0.0
    %238 = vmatprep.subr.mxu0 0.0
    %239 = vmatpush1.xpose.msra.mxu0 0.0
    %240 = vmatprep.subr.mxu0 0.0
    %241 = vmatpush1.xpose.msra.mxu0 0.0
    %242 = vmatprep.subr.mxu0 0.0
    %243 = vmatpush1.xpose.msra.mxu0 0.0
    %244 = vmatprep.subr.mxu0 0.0
    %245 = vmatpush1.xpose.msra.mxu0 0.0
    %246 = vmatprep.subr.mxu0 0.0
    %247 = vmatpush1.xpose.msra.mxu0 0.0
    %248 = vmatprep.subr.mxu0 0.0
    %249 = vmatpush1.xpose.msra.mxu0 0.0
    %250 = vmatprep.subr.mxu0 0.0
    %251 = vmatpush1.xpose.msra.mxu0 0.0
    %252 = vmatprep.subr.mxu0 0.0
    %253 = vmatpush1.xpose.msra.mxu0 0.0
    %254 = vmatprep.subr.mxu0 0.0
    %255 = vmatpush1.xpose.msra.mxu0 0.0
    %256 = vmatprep.subr.mxu0 0.0
    %257 = vmatpush1.xpose.msra.mxu0 0.0
    %258 = vmatprep.subr.mxu0 0.0
    %259 = vmatpush1.xpose.msra.mxu0 0.0
    %260 = vmatprep.subr.mxu0 0.0
    %261 = vmatpush1.xpose.msra.mxu0 0.0
    %262 = vmatprep.subr.mxu0 0.0
    %263 = vmatpush1.xpose.msra.mxu0 0.0
    %264 = vmatprep.subr.mxu0 0.0
    %265 = vmatpush1.xpose.msra.mxu0 0.0
    %266 = vmatprep.subr.mxu0 0.0
    %267 = vmatpush1.xpose.msra.mxu0 0.0
    %268 = vmatprep.subr.mxu0 0.0
    %269 = vmatpush1.xpose.msra.mxu0 0.0
    %270 = vmatprep.subr.mxu0 0.0
    %271 = vmatpush1.xpose.msra.mxu0 0.0
    %272 = vmatprep.subr.mxu0 0.0
    %273 = vmatpush1.xpose.msra.mxu0 0.0
    %274 = vmatprep.subr.mxu0 0.0
    %275 = vmatpush1.xpose.msra.mxu0 0.0
    %276 = vmatprep.subr.mxu0 0.0
    %277 = vmatpush1.xpose.msra.mxu0 0.0
    %278 = vmatprep.subr.mxu0 0.0
    %279 = vmatpush1.xpose.msra.mxu0 0.0
    %280 = vmatprep.subr.mxu0 0.0
    %281 = vmatpush1.xpose.msra.mxu0 0.0
    %282 = vmatprep.subr.mxu0 0.0
    %283 = vmatpush1.xpose.msra.mxu0 0.0
    %284 = vmatprep.subr.mxu0 0.0
    %285 = vmatpush1.xpose.msra.mxu0 0.0
    %286 = vmatprep.subr.mxu0 0.0
    %287 = vmatpush1.xpose.msra.mxu0 0.0
    %288 = vmatprep.subr.mxu0 0.0
    %289 = vmatpush1.xpose.msra.mxu0 0.0
    %290 = vmatprep.mubr.f32.mxu0 %v43
    %291 = vmatmul.mubr.f32.gmra.mrb[0].mxu0 %v42
    %v292 = vpop.f32.mrb[0].mxu0
    %v293 = vadd.f32 %v223, %v292
    %v294 = vpop.f32.mrb[0].mxu0
    %295 = vdwg.mxu0
    %vm296 = vcmask 15360
    %297 = vst.msk [vmem:[%s3] sm:$0xff] %vm296, %v293
    // Predicated region
    $region22: #{tpu_custom_call.1} parent=1 // pred_check
      _
    $region23: #{tpu_custom_call.1} parent=1 // pred_check_branch
      %299 = sbr.rel (0) target = $region25
    $region24: #{tpu_custom_call.1} parent=1 // pred_region
      _
    $region25: #{tpu_custom_call.1} parent=1 // pred_fallthru
      _
    // Predicated region
    $region26: #{tpu_custom_call.1} parent=1 // pred_check
      _
    $region27: #{tpu_custom_call.1} parent=1 // pred_check_branch
      %301 = sbr.rel (0) target = $region29
    $region28: #{tpu_custom_call.1} parent=1 // pred_region
      _
    $region29: #{tpu_custom_call.1} parent=1 // pred_fallthru
      _
    %302 = vsyncpa [#allocation3], 1
    %303 = vsyncpa [#allocation5], 1

</llo_original>
